<compile_context>
chip_gen: v7x
topology: tpu7x:2x2x1
jax: 0.10.0
libtpu: 0.0.40
codegen_flags: <defaults>
</compile_context>

<pallas_src>
import math
from functools import partial

import jax
import jax.numpy as jnp
from jax.experimental import pallas as pl
from jax.experimental.pallas import tpu as pltpu


def _round_up(v, m):
    return ((v + m - 1) // m) * m


def _vmem_budget_bytes():
    """VMEM working-set budget with headroom for compiler scratch."""
    try:
        info = pltpu.get_tpu_info()
        cap = int(getattr(info, "vmem_capacity_bytes", 0) or 0)
        if cap > 0:
            return (cap * 3) // 4          # leave 25% headroom
    except Exception:
        pass
    # Conservative fallback: fits v7x's 64 MiB physical VMEM with headroom and
    # is well inside v5e/v6e's 128 MiB.
    return 48 << 20


def _select_tiles(m, n, k, x_bytes, w_bytes, o_bytes, need_acc, budget, sublane):
    """Pick (tm, tn, tk, grid_k); prefer full-K residency (grid_k == 1)."""

    def ws(tm, tn, tk, with_acc):
        s = (2 * tm * tk * x_bytes          # double-buffered activation tile
             + 2 * tk * tn * w_bytes        # double-buffered weight tile
             + 2 * tm * tn * o_bytes        # double-buffered output tile
             + 2 * 8 * max(tn, 128) * 4)    # bias row (sublane/lane padded)
        if with_acc:
            s += tm * tn * 4                # f32 accumulator scratch
        return s

    tm_full = min(_round_up(m, sublane), 512)
    tm_opts = [tm_full] if tm_full <= 256 else sorted({tm_full, 256}, reverse=True)
    tn_opts = [n] if n <= 1024 else [1024, 512, 256]

    # 1) Full-K residency: one dot per output tile, no reduction grid axis,
    #    no accumulator, both grid axes "parallel".
    for tm in tm_opts:
        for tn in tn_opts:
            if ws(tm, tn, k, with_acc=False) <= budget:
                return tm, tn, k, 1

    # 2) Tiled K (K-last "arbitrary" axis). tk must divide K exactly so no
    #    garbage enters the reduction; prefer 256-granular (full 256x256 MXU
    #    tile on v6e/v7x), then 128-granular (v5e MXU granularity).
    tm, tn = tm_opts[-1], tn_opts[-1]
    for gran in (256, 128):
        tk = (min(k, 4096) // gran) * gran
        while tk >= gran:
            if k % tk == 0 and ws(tm, tn, tk, with_acc=need_acc) <= budget:
                return tm, tn, tk, k // tk
            tk -= gran

    # 3) Last resort: odd K with no lane-aligned divisor -> keep K resident.
    # TODO(synk): a masked last-K-tile path would be safer for huge odd K.
    return tm, tn, k, 1


# ---------------------------------------------------------------------------
# Kernels
# ---------------------------------------------------------------------------

def _linear_fullk_kernel(x_ref, w_ref, b_ref, o_ref):
    # x_ref: (tm, K); w_ref: (K, tn); b_ref: (1, tn); o_ref: (tm, tn)
    acc = jnp.dot(x_ref[...], w_ref[...], preferred_element_type=jnp.float32)
    o_ref[...] = (acc + b_ref[...].astype(jnp.float32)).astype(o_ref.dtype)


def _linear_ktiled_f32out_kernel(x_ref, w_ref, b_ref, o_ref):
    # f32 output: accumulate directly into the resident output block.
    kk = pl.program_id(2)

    @pl.when(kk == 0)
    def _():
        o_ref[...] = jnp.zeros_like(o_ref)

    o_ref[...] += jnp.dot(x_ref[...], w_ref[...],
                          preferred_element_type=jnp.float32)

    @pl.when(kk == pl.num_programs(2) - 1)
    def _():
        o_ref[...] += b_ref[...].astype(o_ref.dtype)


def _linear_ktiled_acc_kernel(x_ref, w_ref, b_ref, o_ref, acc_ref):
    # Non-f32 output: f32 accumulator scratch, bias-add + downcast at k==last.
    kk = pl.program_id(2)

    @pl.when(kk == 0)
    def _():
        acc_ref[...] = jnp.zeros_like(acc_ref)

    acc_ref[...] += jnp.dot(x_ref[...], w_ref[...],
                            preferred_element_type=jnp.float32)

    @pl.when(kk == pl.num_programs(2) - 1)
    def _():
        o_ref[...] = (acc_ref[...] + b_ref[...].astype(jnp.float32)).astype(o_ref.dtype)


# ---------------------------------------------------------------------------
# Wrapper
# ---------------------------------------------------------------------------

def meta_linear(x, weight, bias, *, compute_dtype=None, vmem_budget_bytes=None):
    """Equivalent of MetaLinear.forward / F.linear(x, weight, bias).

    x:      (..., in_features)
    weight: (out_features, in_features)   (PyTorch convention)
    bias:   (out_features,)
    compute_dtype: optional operand dtype (e.g. jnp.bfloat16) for a faster,
        lossy MXU path.  Default None keeps full input precision.
    """
    orig_shape = x.shape
    in_features = orig_shape[-1]
    out_features = weight.shape[0]
    assert weight.shape == (out_features, in_features)
    assert bias.shape == (out_features,)

    out_dtype = x.dtype

    x2 = x.reshape(-1, in_features)
    m = x2.shape[0]

    # One-time wrapper-side relayout / cast (amortized over all output tiles):
    # weight goes to (K, N) so the kernel runs a plain (tm,tk)x(tk,tn) dot.
    w_t = weight.T
    if compute_dtype is not None:
        cd = jnp.dtype(compute_dtype)
        x2 = x2.astype(cd)
        w_t = w_t.astype(cd)
    b2 = bias.reshape(1, out_features)

    x_bytes = x2.dtype.itemsize
    w_bytes = w_t.dtype.itemsize
    o_bytes = jnp.dtype(out_dtype).itemsize
    sublane = max(8, 32 // x_bytes)        # 8 for f32, 16 for bf16, 32 for int8/fp8

    budget = vmem_budget_bytes if vmem_budget_bytes is not None else _vmem_budget_bytes()
    need_acc = jnp.dtype(out_dtype) != jnp.float32
    tm, tn, tk, grid_k = _select_tiles(
        m, out_features, in_features, x_bytes, w_bytes, o_bytes,
        need_acc, budget, sublane)

    grid_m = pl.cdiv(m, tm)
    grid_n = pl.cdiv(out_features, tn)

    working_set = (2 * tm * tk * x_bytes + 2 * tk * tn * w_bytes
                   + 2 * tm * tn * o_bytes + 2 * 8 * max(tn, 128) * 4
                   + (tm * tn * 4 if (grid_k > 1 and need_acc) else 0))
    vmem_limit = int(max(32 << 20, working_set + (8 << 20)))

    cost = pl.CostEstimate(
        flops=2 * m * out_features * in_features,
        transcendentals=0,
        bytes_accessed=int(x2.size * x_bytes + w_t.size * w_bytes
                           + bias.size * bias.dtype.itemsize
                           + m * out_features * o_bytes))

    if grid_k == 1:
        # Full-K residency: 2-D grid, both axes parallel, no accumulator.
        out = pl.pallas_call(
            _linear_fullk_kernel,
            out_shape=jax.ShapeDtypeStruct((m, out_features), out_dtype),
            grid_spec=pltpu.PrefetchScalarGridSpec(
                num_scalar_prefetch=0,
                grid=(grid_m, grid_n),
                in_specs=[
                    pl.BlockSpec((tm, tk), lambda i, j: (i, 0)),   # x (tm, K)
                    pl.BlockSpec((tk, tn), lambda i, j: (0, j)),   # W^T (K, tn)
                    pl.BlockSpec((1, tn), lambda i, j: (0, j)),    # bias row
                ],
                out_specs=pl.BlockSpec((tm, tn), lambda i, j: (i, j)),
            ),
            compiler_params=pltpu.CompilerParams(
                dimension_semantics=("parallel", "parallel"),
                vmem_limit_bytes=vmem_limit),
            cost_estimate=cost,
        )(x2, w_t, b2)
    else:
        # Tiled-K fallback: K-last reduction axis; accumulate in o_ref when the
        # output is f32, otherwise in an f32 VMEM scratch.
        kernel = _linear_ktiled_acc_kernel if need_acc else _linear_ktiled_f32out_kernel
        scratch = [pltpu.VMEM((tm, tn), jnp.float32)] if need_acc else []
        out = pl.pallas_call(
            kernel,
            out_shape=jax.ShapeDtypeStruct((m, out_features), out_dtype),
            grid_spec=pltpu.PrefetchScalarGridSpec(
                num_scalar_prefetch=0,
                grid=(grid_m, grid_n, grid_k),
                in_specs=[
                    pl.BlockSpec((tm, tk), lambda i, j, kk: (i, kk)),   # x tile
                    pl.BlockSpec((tk, tn), lambda i, j, kk: (kk, j)),   # W^T tile
                    pl.BlockSpec((1, tn), lambda i, j, kk: (0, j)),     # bias row
                ],
                out_specs=pl.BlockSpec((tm, tn), lambda i, j, kk: (i, j)),
                scratch_shapes=scratch,
            ),
            compiler_params=pltpu.CompilerParams(
                dimension_semantics=("parallel", "parallel", "arbitrary"),
                vmem_limit_bytes=vmem_limit),
            cost_estimate=cost,
        )(x2, w_t, b2)

    return out.reshape(*orig_shape[:-1], out_features)


def init_meta_linear_params(key, in_features, out_features, dtype=jnp.float32):
    """nn.Linear default init: kaiming_uniform(a=sqrt(5)) weight and uniform
    bias, both with bound 1/sqrt(fan_in)."""
    kw, kb = jax.random.split(key)
    bound = 1.0 / math.sqrt(in_features)
    weight = jax.random.uniform(kw, (out_features, in_features), dtype,
                                minval=-bound, maxval=bound)
    bias = jax.random.uniform(kb, (out_features,), dtype,
                              minval=-bound, maxval=bound)
    return weight, bias


if __name__ == "__main__":
    key = jax.random.PRNGKey(0)
    k_x, k_p, k_x2, k_p2, k_x3, k_p3, k_x4, k_p4 = jax.random.split(key, 8)

    # 1) Small demo shape consistent with MetaLinear's forward (full-K path).
    batch, in_features, out_features = 8, 32, 64
    x = jax.random.normal(k_x, (batch, in_features), dtype=jnp.float32)
    weight, bias = init_meta_linear_params(k_p, in_features, out_features)
    y = jax.block_until_ready(meta_linear(x, weight, bias))
    y_ref = x @ weight.T + bias
    assert y.shape == (batch, out_features)
    assert jnp.allclose(y, y_ref, atol=1e-5, rtol=1e-5)

    # 2) Larger shape with partial (masked) M/N blocks, still full-K resident.
    m2, in2, out2 = 200, 1024, 320
    x_big = jax.random.normal(k_x2, (m2, in2), dtype=jnp.float32)
    w_big, b_big = init_meta_linear_params(k_p2, in2, out2)
    y_big = jax.block_until_ready(meta_linear(x_big, w_big, b_big))
    y_big_ref = x_big @ w_big.T + b_big
    assert y_big.shape == (m2, out2)
    assert jnp.allclose(y_big, y_big_ref, atol=1e-4, rtol=1e-5)

    # 3) bf16 compute path (wrapper-side cast; lossy vs. f32 F.linear).
    m3, in3, out3 = 64, 256, 128
    x3 = jax.random.normal(k_x3, (m3, in3), dtype=jnp.float32)
    w3, b3 = init_meta_linear_params(k_p3, in3, out3)
    y3 = jax.block_until_ready(meta_linear(x3, w3, b3, compute_dtype=jnp.bfloat16))
    y3_ref = x3 @ w3.T + b3
    assert jnp.allclose(y3, y3_ref, atol=5e-2, rtol=5e-2)

    # 4) Force the tiled-K fallback (f32 output -> accumulate in o_ref) with a
    #    tiny artificial VMEM budget.
    m4, in4, out4 = 256, 1024, 512
    x4 = jax.random.normal(k_x4, (m4, in4), dtype=jnp.float32)
    w4, b4 = init_meta_linear_params(k_p4, in4, out4)
    y4 = jax.block_until_ready(
        meta_linear(x4, w4, b4, vmem_budget_bytes=3 << 20))
    y4_ref = x4 @ w4.T + b4
    assert jnp.allclose(y4, y4_ref, atol=1e-4, rtol=1e-5)

    # 5) Force the tiled-K fallback with an f32 accumulator scratch (bf16 I/O).
    m5, in5, out5 = 128, 512, 256
    x5 = jax.random.normal(k_x, (m5, in5), dtype=jnp.float32).astype(jnp.bfloat16)
    w5_f, b5_f = init_meta_linear_params(k_p, in5, out5)
    w5, b5 = w5_f.astype(jnp.bfloat16), b5_f.astype(jnp.bfloat16)
    y5 = jax.block_until_ready(
        meta_linear(x5, w5, b5, vmem_budget_bytes=1 << 19))
    y5_ref = (x5.astype(jnp.float32) @ w5.astype(jnp.float32).T
              + b5.astype(jnp.float32)).astype(jnp.bfloat16)
    assert y5.dtype == jnp.bfloat16
    assert jnp.allclose(y5.astype(jnp.float32), y5_ref.astype(jnp.float32),
                        atol=1e-2, rtol=1e-2)

    print("KERNEL_OK")
</pallas_src>

<mosaic_0001>
module attributes {stable_mosaic.version = 11 : i64} {
  func.func @_linear_fullk_kernel(%arg0: i32, %arg1: i32, %arg2: memref<8x32xf32, #tpu.memory_space<vmem>>, %arg3: memref<32x64xf32, #tpu.memory_space<vmem>>, %arg4: memref<1x64xf32, #tpu.memory_space<vmem>>, %arg5: memref<8x64xf32, #tpu.memory_space<vmem>>) attributes {dimension_semantics = [#tpu.dimension_semantics<parallel>, #tpu.dimension_semantics<parallel>], iteration_bounds = array<i64: 1, 1>, scalar_prefetch = 0 : i64, scratch_operands = 0 : i64, tpu.core_type = #tpu.core_type<tc>, window_params = [{transform_indices = @transform_0, window_bounds = array<i64: 8, 32>}, {transform_indices = @transform_1, window_bounds = array<i64: 32, 64>}, {transform_indices = @transform_2, window_bounds = array<i64: 1, 64>}, {transform_indices = @transform_3, window_bounds = array<i64: 8, 64>}]} {
    %c0 = arith.constant 0 : index
    %c0_0 = arith.constant 0 : index
    %0 = vector.load %arg2[%c0, %c0_0] : memref<8x32xf32, #tpu.memory_space<vmem>>, vector<8x32xf32>
    %c0_1 = arith.constant 0 : index
    %c0_2 = arith.constant 0 : index
    %1 = vector.load %arg3[%c0_1, %c0_2] : memref<32x64xf32, #tpu.memory_space<vmem>>, vector<32x64xf32>
    %cst = arith.constant dense<0.000000e+00> : vector<8x64xf32>
    %2 = tpu.matmul %0, %1, %cst {dimension_numbers = #tpu.dot_dimension_numbers<[1], [0], [0], [1], [0, 0, 1, 1], [], []>} : vector<8x32xf32>, vector<32x64xf32>, vector<8x64xf32> -> vector<8x64xf32>
    %c0_3 = arith.constant 0 : index
    %c0_4 = arith.constant 0 : index
    %3 = vector.load %arg4[%c0_3, %c0_4] : memref<1x64xf32, #tpu.memory_space<vmem>>, vector<1x64xf32>
    %4 = vector.broadcast %3 : vector<1x64xf32> to vector<8x64xf32>
    %5 = arith.addf %2, %4 : vector<8x64xf32>
    %c0_5 = arith.constant 0 : index
    %c0_6 = arith.constant 0 : index
    %6 = vector.load %arg5[%c0_5, %c0_6] : memref<8x64xf32, #tpu.memory_space<vmem>>, vector<8x64xf32>
    tpu.vector_store %arg5[%c0_5, %c0_6], %5 {strides = array<i32>} : memref<8x64xf32, #tpu.memory_space<vmem>>, vector<8x64xf32>,
    return
  }
  func.func @transform_0(%arg0: i32, %arg1: i32) -> (i32, i32) {
    %c0_i32 = arith.constant 0 : i32
    %c0_i32_0 = arith.constant 0 : i32
    return %arg0, %c0_i32 : i32, i32
  }
  func.func @transform_1(%arg0: i32, %arg1: i32) -> (i32, i32) {
    %c0_i32 = arith.constant 0 : i32
    %c0_i32_0 = arith.constant 0 : i32
    return %c0_i32, %arg1 : i32, i32
  }
  func.func @transform_2(%arg0: i32, %arg1: i32) -> (i32, i32) {
    %c0_i32 = arith.constant 0 : i32
    %c0_i32_0 = arith.constant 0 : i32
    return %c0_i32, %arg1 : i32, i32
  }
  func.func @transform_3(%arg0: i32, %arg1: i32) -> (i32, i32) {
    %c0_i32 = arith.constant 0 : i32
    return %arg0, %arg1 : i32, i32
  }
}

</mosaic_0001>

<llo_original>
// kernel: tpu_custom_call.1
$region0: #{tpu_custom_call.1}
  #allocation0 [shape = 'u32[]', space=smem, size = 0x4, offset = 0x4, fixed_abs, tag = 'smem constant byte address 0x4 - core index']
  #allocation1 [shape = 'u32[144,128]{1,0:T(1,128)}', space=vmem, size = 0x12000, scoped, tag = 'internal scratch']
  %s0 = inlined_call_operand.hbm [shape: f32[8,32], index: 0, kind: input, shape index: {}]
  %s1 = inlined_call_operand.hbm [shape: f32[32,64], index: 1, kind: input, shape index: {}]
  %s2 = inlined_call_operand.vmem [shape: f32[1,64], index: 2, kind: input, shape index: {}]
  %s3 = inlined_call_operand.hbm [shape: f32[8,64], index: 3, kind: output, shape index: {}]
  %s4 = sld [smem:[#allocation0]]
  $region30: #{tpu_custom_call.1} parent=0
    _
  %s6 = ssub.s32 1, %s4
  %s7 = scalar_select 0, %s6, %s4
  $region1: #{tpu_custom_call.1} parent=0
    #allocation2 [shape = 'u8[4096]{0}', space=vmem, size = 0x1000, scoped, tag = 'input window, operand 0, single buffered']
    #allocation3 [shape = 's32[1]{0}', space=sflag, size = 0x4, scoped, tag = 'scoped memory for tpu_custom_call.1']
    #allocation4 [shape = 's32[1]{0}', space=sflag, size = 0x4, scoped, tag = 'scoped memory for tpu_custom_call.1']
    #allocation5 [shape = 'u8[16384]{0}', space=vmem, size = 0x4000, scoped, tag = 'input window, operand 1, single buffered']
    #allocation6 [shape = 's32[1]{0}', space=sflag, size = 0x4, scoped, tag = 'scoped memory for tpu_custom_call.1']
    #allocation7 [shape = 'u8[4096]{0}', space=vmem, size = 0x1000, scoped, tag = 'output window, operand 0, single buffered']
    %8 = vsyncpa [#allocation3], 0
    %9 = vsyncpa [#allocation6], 0
    %10 = vsyncpa [#allocation4], 0
    // Predicated region
    $region2: #{tpu_custom_call.1} parent=1 // pred_check
      _
    $region3: #{tpu_custom_call.1} parent=1 // pred_check_branch
      %12 = sbr.rel (0) target = $region5
    $region4: #{tpu_custom_call.1} parent=1 // pred_region
      %s14 = ssub.s32 128, 128
      %15 = vsyncadd [#allocation3], %s14
      %s17 = sshll.u32 [#allocation2], 4
      %s18 = int_to_ptr.vmem [resolvable:$true] %s17
      %20 = dma.hbm_to_vmem [thread:$0]  %s0, 128, %s18, [#allocation3]
    $region5: #{tpu_custom_call.1} parent=1 // pred_fallthru
      _
    // Predicated region
    $region6: #{tpu_custom_call.1} parent=1 // pred_check
      _
    $region7: #{tpu_custom_call.1} parent=1 // pred_check_branch
      %22 = sbr.rel (0) target = $region9
    $region8: #{tpu_custom_call.1} parent=1 // pred_region
      %s24 = ssub.s32 512, 512
      %25 = vsyncadd [#allocation6], %s24
      %s26 = sshll.u32 [#allocation5], 4
      %s27 = int_to_ptr.vmem [resolvable:$true] %s26
      %32 = dma.hbm_to_vmem [thread:$0]  %s1, 512, %s27, [#allocation6], 128, 128, 8
    $region9: #{tpu_custom_call.1} parent=1 // pred_fallthru
      _
    // Predicated region
    $region10: #{tpu_custom_call.1} parent=1 // pred_check
      _
    $region11: #{tpu_custom_call.1} parent=1 // pred_check_branch
      %34 = sbr.rel (0) target = $region13
    $region12: #{tpu_custom_call.1} parent=1 // pred_region
      _
    $region13: #{tpu_custom_call.1} parent=1 // pred_fallthru
      _
    // Predicated region
    $region14: #{tpu_custom_call.1} parent=1 // pred_check
      _
    $region15: #{tpu_custom_call.1} parent=1 // pred_check_branch
      %36 = sbr.rel (0) target = $region17
    $region16: #{tpu_custom_call.1} parent=1 // pred_region
      %37 = dma.done [#allocation3], 128
    $region17: #{tpu_custom_call.1} parent=1 // pred_fallthru
      _
    // Predicated region
    $region18: #{tpu_custom_call.1} parent=1 // pred_check
      _
    $region19: #{tpu_custom_call.1} parent=1 // pred_check_branch
      %39 = sbr.rel (0) target = $region21
    $region20: #{tpu_custom_call.1} parent=1 // pred_region
      %40 = dma.done [#allocation6], 512
    $region21: #{tpu_custom_call.1} parent=1 // pred_fallthru
      _
    %v41 = vld [vmem:[#allocation2] sm:$0xff]
    %v42 = vld [vmem:[#allocation5] sm:$0xff]
    %v43 = vld [vmem:[#allocation5 + $0x8] sm:$0xff]
    %v44 = vld [vmem:[#allocation5 + $0x10] sm:$0xff]
    %v45 = vld [vmem:[#allocation5 + $0x18] sm:$0xff]
    %v46 = vld [vmem:[%s2] sm:$0x1]
    %v48 = vlaneseq
    %v49 = vshrl.u32 %v48, 7
    %v50 = vsub.s32 0, %v49
    %v51 = vrot.slane %v46, %v50
    %vm53 = vcmask 261120
    %v55 = vsel %vm53, %v41, 0
    %57 = vmatprep.subr.mxu0 0.0
    %58 = vmatpush1.msra.mxu0 %v42
    %59 = vmatprep.subr.mxu0 0.0
    %60 = vmatpush1.msra.mxu0 %v43
    %61 = vmatprep.subr.mxu0 0.0
    %62 = vmatpush1.msra.mxu0 %v44
    %63 = vmatprep.subr.mxu0 0.0
    %64 = vmatpush1.msra.mxu0 %v45
    %65 = vmatprep.subr.mxu0 0.0
    %66 = vmatpush1.msra.mxu0 0.0
    %67 = vmatprep.subr.mxu0 0.0
    %68 = vmatpush1.msra.mxu0 0.0
    %69 = vmatprep.subr.mxu0 0.0
    %70 = vmatpush1.msra.mxu0 0.0
    %71 = vmatprep.subr.mxu0 0.0
    %72 = vmatpush1.msra.mxu0 0.0
    %73 = vmatprep.subr.mxu0 0.0
    %74 = vmatpush1.msra.mxu0 0.0
    %75 = vmatprep.subr.mxu0 0.0
    %76 = vmatpush1.msra.mxu0 0.0
    %77 = vmatprep.subr.mxu0 0.0
    %78 = vmatpush1.msra.mxu0 0.0
    %79 = vmatprep.subr.mxu0 0.0
    %80 = vmatpush1.msra.mxu0 0.0
    %81 = vmatprep.subr.mxu0 0.0
    %82 = vmatpush1.msra.mxu0 0.0
    %83 = vmatprep.subr.mxu0 0.0
    %84 = vmatpush1.msra.mxu0 0.0
    %85 = vmatprep.subr.mxu0 0.0
    %86 = vmatpush1.msra.mxu0 0.0
    %87 = vmatprep.subr.mxu0 0.0
    %88 = vmatpush1.msra.mxu0 0.0
    %89 = vmatprep.subr.mxu0 0.0
    %90 = vmatpush1.msra.mxu0 0.0
    %91 = vmatprep.subr.mxu0 0.0
    %92 = vmatpush1.msra.mxu0 0.0
    %93 = vmatprep.subr.mxu0 0.0
    %94 = vmatpush1.msra.mxu0 0.0
    %95 = vmatprep.subr.mxu0 0.0
    %96 = vmatpush1.msra.mxu0 0.0
    %97 = vmatprep.subr.mxu0 0.0
    %98 = vmatpush1.msra.mxu0 0.0
    %99 = vmatprep.subr.mxu0 0.0
    %100 = vmatpush1.msra.mxu0 0.0
    %101 = vmatprep.subr.mxu0 0.0
    %102 = vmatpush1.msra.mxu0 0.0
    %103 = vmatprep.subr.mxu0 0.0
    %104 = vmatpush1.msra.mxu0 0.0
    %105 = vmatprep.subr.mxu0 0.0
    %106 = vmatpush1.msra.mxu0 0.0
    %107 = vmatprep.subr.mxu0 0.0
    %108 = vmatpush1.msra.mxu0 0.0
    %109 = vmatprep.subr.mxu0 0.0
    %110 = vmatpush1.msra.mxu0 0.0
    %111 = vmatprep.subr.mxu0 0.0
    %112 = vmatpush1.msra.mxu0 0.0
    %113 = vmatprep.subr.mxu0 0.0
    %114 = vmatpush1.msra.mxu0 0.0
    %115 = vmatprep.subr.mxu0 0.0
    %116 = vmatpush1.msra.mxu0 0.0
    %117 = vmatprep.subr.mxu0 0.0
    %118 = vmatpush1.msra.mxu0 0.0
    %119 = vmatprep.subr.mxu0 0.0
    %120 = vmatpush1.msra.mxu0 0.0
    %121 = vmatprep.mubr.f32.mxu0 0.0
    %122 = vmatmul.mubr.f32.gmra.mrb[0].mxu0 %v55
    %v123 = vpop.f32.mrb[0].mxu0
    %v124 = vadd.f32 %v51, %v123
    %v125 = vpop.f32.mrb[0].mxu0
    %126 = vdwg.mxu0
    %vm127 = vcmask 523264
    %128 = vst.msk [vmem:[#allocation7] sm:$0xff] %vm127, %v124
    // Predicated region
    $region22: #{tpu_custom_call.1} parent=1 // pred_check
      _
    $region23: #{tpu_custom_call.1} parent=1 // pred_check_branch
      %130 = sbr.rel (0) target = $region25
    $region24: #{tpu_custom_call.1} parent=1 // pred_region
      %s132 = ssub.s32 128, 128
      %133 = vsyncadd [#allocation4], %s132
      %s135 = sshll.u32 [#allocation7], 4
      %s136 = int_to_ptr.vmem [resolvable:$true] %s135
      %138 = dma.vmem_to_hbm [thread:$0]  %s136, 128, %s3, [#allocation4]
    $region25: #{tpu_custom_call.1} parent=1 // pred_fallthru
      _
    // Predicated region
    $region26: #{tpu_custom_call.1} parent=1 // pred_check
      _
    $region27: #{tpu_custom_call.1} parent=1 // pred_check_branch
      %140 = sbr.rel (0) target = $region29
    $region28: #{tpu_custom_call.1} parent=1 // pred_region
      %141 = dma.done [#allocation4], 128
    $region29: #{tpu_custom_call.1} parent=1 // pred_fallthru
      _
    %142 = vsyncpa [#allocation3], 1
    %143 = vsyncpa [#allocation6], 1
    %144 = vsyncpa [#allocation4], 1

</llo_original>
